<compile_context>
chip_gen: v6e
topology: v6e:2x2x1
jax: 0.10.0
libtpu: 0.0.40
codegen_flags: <defaults>
</compile_context>

<pallas_src>
import jax
import jax.numpy as jnp
from jax.experimental import pallas as pl
from jax.experimental.pallas import tpu as pltpu

_EPS = 1e-12            # torch.nn.functional.normalize default
_EPS_SQ = _EPS * _EPS   # clamp on the squared norm (still a normal f32)
_LANES = 128
_MAX_SUBLANES = 512     # per-step block: 6*512*128*4 B in, 9*512*128*4 B out


def _rot6d_kernel(x_ref, o_ref):
    # x_ref: (6, S, 128) ; o_ref: (9, S, 128). Each row slice is a dense
    # (S, 128) tile.
    a1x, a1y, a1z = x_ref[0], x_ref[1], x_ref[2]
    a2x, a2y, a2z = x_ref[3], x_ref[4], x_ref[5]

    # b1 = normalize(a1)
    inv1 = jax.lax.rsqrt(jnp.maximum(a1x * a1x + a1y * a1y + a1z * a1z, _EPS_SQ))
    b1x, b1y, b1z = a1x * inv1, a1y * inv1, a1z * inv1

    # dot = <b1, a2>
    dot = b1x * a2x + b1y * a2y + b1z * a2z

    # b2 = normalize(a2 - dot * b1)
    u2x = a2x - dot * b1x
    u2y = a2y - dot * b1y
    u2z = a2z - dot * b1z
    inv2 = jax.lax.rsqrt(jnp.maximum(u2x * u2x + u2y * u2y + u2z * u2z, _EPS_SQ))
    b2x, b2y, b2z = u2x * inv2, u2y * inv2, u2z * inv2

    # Store components directly into their output rows (no concatenate /
    # sublane repacking inside the kernel).
    o_ref[0] = b1x
    o_ref[1] = b1y
    o_ref[2] = b1z
    o_ref[3] = b2x
    o_ref[4] = b2y
    o_ref[5] = b2z
    # b3 = b1 x b2
    o_ref[6] = b1y * b2z - b1z * b2y
    o_ref[7] = b1z * b2x - b1x * b2z
    o_ref[8] = b1x * b2y - b1y * b2x


def continuous_rot_repr_decoder(module_input):
    """JAX/Pallas equivalent of ContinousRotReprDecoder.forward.

    module_input: any float array whose total size is divisible by 6.
    Returns: (N, 3, 3) float32 rotation matrices, N = size // 6.
    """
    x = jnp.asarray(module_input, dtype=jnp.float32)
    reshaped = x.reshape(-1, 3, 2)          # (N, 3, 2)
    n = reshaped.shape[0]

    # (N, 3, 2) -> (6, N), row order a1x,a1y,a1z,a2x,a2y,a2z (one transpose).
    xt = reshaped.transpose(2, 1, 0).reshape(6, n)

    # Pack the batch axis densely as (sublane, lane) = (m_pad, 128).
    m = pl.cdiv(n, _LANES)
    s_block = min(_MAX_SUBLANES, ((m + 7) // 8) * 8)    # sublane chunk per step
    m_pad = ((m + s_block - 1) // s_block) * s_block
    n_pad = m_pad * _LANES
    if n_pad != n:
        # Zero padding is safe: rsqrt(max(0, eps^2)) * 0 == 0, no NaNs produced.
        xt = jnp.pad(xt, ((0, 0), (0, n_pad - n)))
    x3d = xt.reshape(6, m_pad, _LANES)

    grid = (m_pad // s_block,)
    out9 = pl.pallas_call(
        _rot6d_kernel,
        out_shape=jax.ShapeDtypeStruct((9, m_pad, _LANES), jnp.float32),
        grid_spec=pltpu.PrefetchScalarGridSpec(
            num_scalar_prefetch=0,
            grid=grid,
            in_specs=[pl.BlockSpec((6, s_block, _LANES), lambda i: (0, i, 0))],
            out_specs=pl.BlockSpec((9, s_block, _LANES), lambda i: (0, i, 0)),
        ),
        compiler_params=pltpu.CompilerParams(
            dimension_semantics=("parallel",),
        ),
        cost_estimate=pl.CostEstimate(
            flops=40 * n_pad,
            transcendentals=2 * n_pad,
            bytes_accessed=60 * n_pad,
        ),
    )(x3d)

    # (9, m_pad, 128) -> (9, N); rows are [b1(3), b2(3), b3(3)] with b_k being
    # column k of the output, so out[n, i, k] = row[k*3 + i]:
    out9 = out9.reshape(9, n_pad)[:, :n]
    return out9.reshape(3, 3, n).transpose(2, 1, 0)


def _reference(module_input):
    x = jnp.asarray(module_input, dtype=jnp.float32).reshape(-1, 3, 2)
    a1 = x[:, :, 0]
    a2 = x[:, :, 1]
    b1 = a1 / jnp.maximum(jnp.linalg.norm(a1, axis=1, keepdims=True), _EPS)
    dot = jnp.sum(b1 * a2, axis=1, keepdims=True)
    u2 = a2 - dot * b1
    b2 = u2 / jnp.maximum(jnp.linalg.norm(u2, axis=1, keepdims=True), _EPS)
    b3 = jnp.cross(b1, b2, axis=1)
    return jnp.stack([b1, b2, b3], axis=-1)


if __name__ == "__main__":
    key = jax.random.PRNGKey(0)
    # batch of 8 six-dim rotation representations -> 8 rotation matrices
    module_input = jax.random.normal(key, (8, 6), dtype=jnp.float32)

    out = continuous_rot_repr_decoder(module_input)
    out = jax.block_until_ready(out)

    ref = _reference(module_input)
    assert out.shape == (8, 3, 3)
    assert jnp.allclose(out, ref, atol=1e-5, rtol=1e-5)
    print("KERNEL_OK")
</pallas_src>

<mosaic_0001>
module attributes {stable_mosaic.version = 11 : i64} {
  func.func @_rot6d_kernel(%arg0: i32, %arg1: memref<6x8x128xf32, #tpu.memory_space<vmem>>, %arg2: memref<9x8x128xf32, #tpu.memory_space<vmem>>) attributes {dimension_semantics = [#tpu.dimension_semantics<parallel>], iteration_bounds = array<i64: 1>, scalar_prefetch = 0 : i64, scratch_operands = 0 : i64, tpu.core_type = #tpu.core_type<tc>, window_params = [{transform_indices = @transform_0, window_bounds = array<i64: 6, 8, 128>}, {transform_indices = @transform_1, window_bounds = array<i64: 9, 8, 128>}]} {
    %c0 = arith.constant 0 : index
    %c0_0 = arith.constant 0 : index
    %c0_1 = arith.constant 0 : index
    %0 = vector.load %arg1[%c0, %c0_0, %c0_1] : memref<6x8x128xf32, #tpu.memory_space<vmem>>, vector<1x8x128xf32>
    %1 = vector.shape_cast %0 : vector<1x8x128xf32> to vector<8x128xf32>
    %c1 = arith.constant 1 : index
    %c0_2 = arith.constant 0 : index
    %c0_3 = arith.constant 0 : index
    %2 = vector.load %arg1[%c1, %c0_2, %c0_3] : memref<6x8x128xf32, #tpu.memory_space<vmem>>, vector<1x8x128xf32>
    %3 = vector.shape_cast %2 : vector<1x8x128xf32> to vector<8x128xf32>
    %c2 = arith.constant 2 : index
    %c0_4 = arith.constant 0 : index
    %c0_5 = arith.constant 0 : index
    %4 = vector.load %arg1[%c2, %c0_4, %c0_5] : memref<6x8x128xf32, #tpu.memory_space<vmem>>, vector<1x8x128xf32>
    %5 = vector.shape_cast %4 : vector<1x8x128xf32> to vector<8x128xf32>
    %c3 = arith.constant 3 : index
    %c0_6 = arith.constant 0 : index
    %c0_7 = arith.constant 0 : index
    %6 = vector.load %arg1[%c3, %c0_6, %c0_7] : memref<6x8x128xf32, #tpu.memory_space<vmem>>, vector<1x8x128xf32>
    %7 = vector.shape_cast %6 : vector<1x8x128xf32> to vector<8x128xf32>
    %c4 = arith.constant 4 : index
    %c0_8 = arith.constant 0 : index
    %c0_9 = arith.constant 0 : index
    %8 = vector.load %arg1[%c4, %c0_8, %c0_9] : memref<6x8x128xf32, #tpu.memory_space<vmem>>, vector<1x8x128xf32>
    %9 = vector.shape_cast %8 : vector<1x8x128xf32> to vector<8x128xf32>
    %c5 = arith.constant 5 : index
    %c0_10 = arith.constant 0 : index
    %c0_11 = arith.constant 0 : index
    %10 = vector.load %arg1[%c5, %c0_10, %c0_11] : memref<6x8x128xf32, #tpu.memory_space<vmem>>, vector<1x8x128xf32>
    %11 = vector.shape_cast %10 : vector<1x8x128xf32> to vector<8x128xf32>
    %12 = arith.mulf %1, %1 : vector<8x128xf32>
    %13 = arith.mulf %3, %3 : vector<8x128xf32>
    %14 = arith.addf %12, %13 : vector<8x128xf32>
    %15 = arith.mulf %5, %5 : vector<8x128xf32>
    %16 = arith.addf %14, %15 : vector<8x128xf32>
    %cst = arith.constant 1.000000e-24 : f32
    %17 = vector.broadcast %cst : f32 to vector<8x128xf32>
    %18 = arith.maximumf %16, %17 : vector<8x128xf32>
    %19 = math.rsqrt %18 : vector<8x128xf32>
    %20 = arith.mulf %1, %19 : vector<8x128xf32>
    %21 = arith.mulf %3, %19 : vector<8x128xf32>
    %22 = arith.mulf %5, %19 : vector<8x128xf32>
    %23 = arith.mulf %20, %7 : vector<8x128xf32>
    %24 = arith.mulf %21, %9 : vector<8x128xf32>
    %25 = arith.addf %23, %24 : vector<8x128xf32>
    %26 = arith.mulf %22, %11 : vector<8x128xf32>
    %27 = arith.addf %25, %26 : vector<8x128xf32>
    %28 = arith.mulf %27, %20 : vector<8x128xf32>
    %29 = arith.subf %7, %28 : vector<8x128xf32>
    %30 = arith.mulf %27, %21 : vector<8x128xf32>
    %31 = arith.subf %9, %30 : vector<8x128xf32>
    %32 = arith.mulf %27, %22 : vector<8x128xf32>
    %33 = arith.subf %11, %32 : vector<8x128xf32>
    %34 = arith.mulf %29, %29 : vector<8x128xf32>
    %35 = arith.mulf %31, %31 : vector<8x128xf32>
    %36 = arith.addf %34, %35 : vector<8x128xf32>
    %37 = arith.mulf %33, %33 : vector<8x128xf32>
    %38 = arith.addf %36, %37 : vector<8x128xf32>
    %cst_12 = arith.constant 1.000000e-24 : f32
    %39 = vector.broadcast %cst_12 : f32 to vector<8x128xf32>
    %40 = arith.maximumf %38, %39 : vector<8x128xf32>
    %41 = math.rsqrt %40 : vector<8x128xf32>
    %42 = arith.mulf %29, %41 : vector<8x128xf32>
    %43 = arith.mulf %31, %41 : vector<8x128xf32>
    %44 = arith.mulf %33, %41 : vector<8x128xf32>
    %c0_13 = arith.constant 0 : index
    %c0_14 = arith.constant 0 : index
    %c0_15 = arith.constant 0 : index
    %45 = vector.load %arg2[%c0_13, %c0_14, %c0_15] : memref<9x8x128xf32, #tpu.memory_space<vmem>>, vector<1x8x128xf32>
    %46 = vector.shape_cast %45 : vector<1x8x128xf32> to vector<8x128xf32>
    %47 = vector.shape_cast %20 : vector<8x128xf32> to vector<1x8x128xf32>
    tpu.vector_store %arg2[%c0_13, %c0_14, %c0_15], %47 {strides = array<i32>} : memref<9x8x128xf32, #tpu.memory_space<vmem>>, vector<1x8x128xf32>,
    %c1_16 = arith.constant 1 : index
    %c0_17 = arith.constant 0 : index
    %c0_18 = arith.constant 0 : index
    %48 = vector.load %arg2[%c1_16, %c0_17, %c0_18] : memref<9x8x128xf32, #tpu.memory_space<vmem>>, vector<1x8x128xf32>
    %49 = vector.shape_cast %48 : vector<1x8x128xf32> to vector<8x128xf32>
    %50 = vector.shape_cast %21 : vector<8x128xf32> to vector<1x8x128xf32>
    tpu.vector_store %arg2[%c1_16, %c0_17, %c0_18], %50 {strides = array<i32>} : memref<9x8x128xf32, #tpu.memory_space<vmem>>, vector<1x8x128xf32>,
    %c2_19 = arith.constant 2 : index
    %c0_20 = arith.constant 0 : index
    %c0_21 = arith.constant 0 : index
    %51 = vector.load %arg2[%c2_19, %c0_20, %c0_21] : memref<9x8x128xf32, #tpu.memory_space<vmem>>, vector<1x8x128xf32>
    %52 = vector.shape_cast %51 : vector<1x8x128xf32> to vector<8x128xf32>
    %53 = vector.shape_cast %22 : vector<8x128xf32> to vector<1x8x128xf32>
    tpu.vector_store %arg2[%c2_19, %c0_20, %c0_21], %53 {strides = array<i32>} : memref<9x8x128xf32, #tpu.memory_space<vmem>>, vector<1x8x128xf32>,
    %c3_22 = arith.constant 3 : index
    %c0_23 = arith.constant 0 : index
    %c0_24 = arith.constant 0 : index
    %54 = vector.load %arg2[%c3_22, %c0_23, %c0_24] : memref<9x8x128xf32, #tpu.memory_space<vmem>>, vector<1x8x128xf32>
    %55 = vector.shape_cast %54 : vector<1x8x128xf32> to vector<8x128xf32>
    %56 = vector.shape_cast %42 : vector<8x128xf32> to vector<1x8x128xf32>
    tpu.vector_store %arg2[%c3_22, %c0_23, %c0_24], %56 {strides = array<i32>} : memref<9x8x128xf32, #tpu.memory_space<vmem>>, vector<1x8x128xf32>,
    %c4_25 = arith.constant 4 : index
    %c0_26 = arith.constant 0 : index
    %c0_27 = arith.constant 0 : index
    %57 = vector.load %arg2[%c4_25, %c0_26, %c0_27] : memref<9x8x128xf32, #tpu.memory_space<vmem>>, vector<1x8x128xf32>
    %58 = vector.shape_cast %57 : vector<1x8x128xf32> to vector<8x128xf32>
    %59 = vector.shape_cast %43 : vector<8x128xf32> to vector<1x8x128xf32>
    tpu.vector_store %arg2[%c4_25, %c0_26, %c0_27], %59 {strides = array<i32>} : memref<9x8x128xf32, #tpu.memory_space<vmem>>, vector<1x8x128xf32>,
    %c5_28 = arith.constant 5 : index
    %c0_29 = arith.constant 0 : index
    %c0_30 = arith.constant 0 : index
    %60 = vector.load %arg2[%c5_28, %c0_29, %c0_30] : memref<9x8x128xf32, #tpu.memory_space<vmem>>, vector<1x8x128xf32>
    %61 = vector.shape_cast %60 : vector<1x8x128xf32> to vector<8x128xf32>
    %62 = vector.shape_cast %44 : vector<8x128xf32> to vector<1x8x128xf32>
    tpu.vector_store %arg2[%c5_28, %c0_29, %c0_30], %62 {strides = array<i32>} : memref<9x8x128xf32, #tpu.memory_space<vmem>>, vector<1x8x128xf32>,
    %63 = arith.mulf %21, %44 : vector<8x128xf32>
    %64 = arith.mulf %22, %43 : vector<8x128xf32>
    %65 = arith.subf %63, %64 : vector<8x128xf32>
    %c6 = arith.constant 6 : index
    %c0_31 = arith.constant 0 : index
    %c0_32 = arith.constant 0 : index
    %66 = vector.load %arg2[%c6, %c0_31, %c0_32] : memref<9x8x128xf32, #tpu.memory_space<vmem>>, vector<1x8x128xf32>
    %67 = vector.shape_cast %66 : vector<1x8x128xf32> to vector<8x128xf32>
    %68 = vector.shape_cast %65 : vector<8x128xf32> to vector<1x8x128xf32>
    tpu.vector_store %arg2[%c6, %c0_31, %c0_32], %68 {strides = array<i32>} : memref<9x8x128xf32, #tpu.memory_space<vmem>>, vector<1x8x128xf32>,
    %69 = arith.mulf %22, %42 : vector<8x128xf32>
    %70 = arith.mulf %20, %44 : vector<8x128xf32>
    %71 = arith.subf %69, %70 : vector<8x128xf32>
    %c7 = arith.constant 7 : index
    %c0_33 = arith.constant 0 : index
    %c0_34 = arith.constant 0 : index
    %72 = vector.load %arg2[%c7, %c0_33, %c0_34] : memref<9x8x128xf32, #tpu.memory_space<vmem>>, vector<1x8x128xf32>
    %73 = vector.shape_cast %72 : vector<1x8x128xf32> to vector<8x128xf32>
    %74 = vector.shape_cast %71 : vector<8x128xf32> to vector<1x8x128xf32>
    tpu.vector_store %arg2[%c7, %c0_33, %c0_34], %74 {strides = array<i32>} : memref<9x8x128xf32, #tpu.memory_space<vmem>>, vector<1x8x128xf32>,
    %75 = arith.mulf %20, %43 : vector<8x128xf32>
    %76 = arith.mulf %21, %42 : vector<8x128xf32>
    %77 = arith.subf %75, %76 : vector<8x128xf32>
    %c8 = arith.constant 8 : index
    %c0_35 = arith.constant 0 : index
    %c0_36 = arith.constant 0 : index
    %78 = vector.load %arg2[%c8, %c0_35, %c0_36] : memref<9x8x128xf32, #tpu.memory_space<vmem>>, vector<1x8x128xf32>
    %79 = vector.shape_cast %78 : vector<1x8x128xf32> to vector<8x128xf32>
    %80 = vector.shape_cast %77 : vector<8x128xf32> to vector<1x8x128xf32>
    tpu.vector_store %arg2[%c8, %c0_35, %c0_36], %80 {strides = array<i32>} : memref<9x8x128xf32, #tpu.memory_space<vmem>>, vector<1x8x128xf32>,
    return
  }
  func.func @transform_0(%arg0: i32) -> (i32, i32, i32) {
    %c0_i32 = arith.constant 0 : i32
    %c0_i32_0 = arith.constant 0 : i32
    %c0_i32_1 = arith.constant 0 : i32
    return %c0_i32, %arg0, %c0_i32_0 : i32, i32, i32
  }
  func.func @transform_1(%arg0: i32) -> (i32, i32, i32) {
    %c0_i32 = arith.constant 0 : i32
    %c0_i32_0 = arith.constant 0 : i32
    %c0_i32_1 = arith.constant 0 : i32
    return %c0_i32, %arg0, %c0_i32_0 : i32, i32, i32
  }
}

</mosaic_0001>

<llo_original>
// kernel: tpu_custom_call.1
$region0: #{tpu_custom_call.1}
  #allocation0 [shape = 'u32[]', space=smem, size = 0x4, offset = 0x4, fixed_abs, tag = 'smem constant byte address 0x4 - core index']
  #allocation1 [shape = 'u32[144,128]{1,0:T(1,128)}', space=vmem, size = 0x12000, scoped, tag = 'internal scratch']
  %s0 = inlined_call_operand.hbm [shape: f32[6,8,128], index: 0, kind: input, shape index: {}]
  %s1 = inlined_call_operand.hbm [shape: f32[9,8,128], index: 1, kind: output, shape index: {}]
  %s2 = sld [smem:[#allocation0]]
  $region18: #{tpu_custom_call.1} parent=0
    _
  %s4 = ssub.s32 1, %s2
  %s5 = scalar_select 0, %s4, %s2
  $region1: #{tpu_custom_call.1} parent=0
    #allocation2 [shape = 'u8[24576]{0}', space=vmem, size = 0x6000, scoped, tag = 'input window, operand 0, single buffered']
    #allocation3 [shape = 's32[1]{0}', space=sflag, size = 0x4, scoped, tag = 'scoped memory for tpu_custom_call.1']
    #allocation4 [shape = 's32[1]{0}', space=sflag, size = 0x4, scoped, tag = 'scoped memory for tpu_custom_call.1']
    #allocation5 [shape = 'u8[36864]{0}', space=vmem, size = 0x9000, scoped, tag = 'output window, operand 0, single buffered']
    %6 = vsyncpa [#allocation3], 0
    %7 = vsyncpa [#allocation4], 0
    // Predicated region
    $region2: #{tpu_custom_call.1} parent=1 // pred_check
      _
    $region3: #{tpu_custom_call.1} parent=1 // pred_check_branch
      %9 = sbr.rel (0) target = $region5
    $region4: #{tpu_custom_call.1} parent=1 // pred_region
      %s11 = ssub.s32 768, 768
      %12 = vsyncadd [#allocation3], %s11
      %s13 = sshll.u32 [#allocation2], 4
      %s14 = int_to_ptr.vmem [resolvable:$true] %s13
      %19 = dma.hbm_to_vmem [thread:$0]  %s0, 768, %s14, [#allocation3], 128, 128, 8
    $region5: #{tpu_custom_call.1} parent=1 // pred_fallthru
      _
    // Predicated region
    $region6: #{tpu_custom_call.1} parent=1 // pred_check
      _
    $region7: #{tpu_custom_call.1} parent=1 // pred_check_branch
      %21 = sbr.rel (0) target = $region9
    $region8: #{tpu_custom_call.1} parent=1 // pred_region
      %22 = dma.done [#allocation3], 768
    $region9: #{tpu_custom_call.1} parent=1 // pred_fallthru
      _
    %v23 = vld [vmem:[#allocation2] sm:$0xff]
    %s24 = scalar_lea.vmem [#allocation2], 8
    %v25 = vld [vmem:[%s24] sm:$0xff]
    %s26 = scalar_lea.vmem [#allocation2], 16
    %v27 = vld [vmem:[%s26] sm:$0xff]
    %s28 = scalar_lea.vmem [#allocation2], 24
    %v29 = vld [vmem:[%s28] sm:$0xff]
    %s30 = scalar_lea.vmem [#allocation2], 32
    %v31 = vld [vmem:[%s30] sm:$0xff]
    %s32 = scalar_lea.vmem [#allocation2], 40
    %v33 = vld [vmem:[%s32] sm:$0xff]
    %v34 = vmul.f32 %v23, %v23
    %v35 = vmul.f32 %v25, %v25
    %v36 = vadd.f32 %v34, %v35
    %v37 = vmul.f32 %v27, %v27
    %v38 = vadd.f32 %v36, %v37
    %v39 = vmax.f32 %v38, 1e-24
    %v40 = vrsqrt.pop %v39
    %v41 = vmul.f32 %v23, %v40
    %v42 = vmul.f32 %v25, %v40
    %v43 = vmul.f32 %v27, %v40
    %v44 = vmul.f32 %v41, %v29
    %v45 = vmul.f32 %v42, %v31
    %v46 = vadd.f32 %v44, %v45
    %v47 = vmul.f32 %v43, %v33
    %v48 = vadd.f32 %v46, %v47
    %v49 = vmul.f32 %v48, %v41
    %v50 = vsub.f32 %v29, %v49
    %v51 = vmul.f32 %v48, %v42
    %v52 = vsub.f32 %v31, %v51
    %v53 = vmul.f32 %v48, %v43
    %v54 = vsub.f32 %v33, %v53
    %v55 = vmul.f32 %v50, %v50
    %v56 = vmul.f32 %v52, %v52
    %v57 = vadd.f32 %v55, %v56
    %v58 = vmul.f32 %v54, %v54
    %v59 = vadd.f32 %v57, %v58
    %v60 = vmax.f32 %v59, 1e-24
    %v61 = vrsqrt.pop %v60
    %v62 = vmul.f32 %v50, %v61
    %v63 = vmul.f32 %v52, %v61
    %v64 = vmul.f32 %v54, %v61
    %65 = vst [vmem:[#allocation5] sm:$0xff] %v41
    %s66 = scalar_lea.vmem [#allocation5], 8
    %67 = vst [vmem:[%s66] sm:$0xff] %v42
    %s68 = scalar_lea.vmem [#allocation5], 16
    %69 = vst [vmem:[%s68] sm:$0xff] %v43
    %s70 = scalar_lea.vmem [#allocation5], 24
    %71 = vst [vmem:[%s70] sm:$0xff] %v62
    %s72 = scalar_lea.vmem [#allocation5], 32
    %73 = vst [vmem:[%s72] sm:$0xff] %v63
    %s74 = scalar_lea.vmem [#allocation5], 40
    %75 = vst [vmem:[%s74] sm:$0xff] %v64
    %v76 = vmul.f32 %v42, %v64
    %v77 = vmul.f32 %v43, %v63
    %v78 = vsub.f32 %v76, %v77
    %s79 = scalar_lea.vmem [#allocation5], 48
    %80 = vst [vmem:[%s79] sm:$0xff] %v78
    %v81 = vmul.f32 %v43, %v62
    %v82 = vmul.f32 %v41, %v64
    %v83 = vsub.f32 %v81, %v82
    %s84 = scalar_lea.vmem [#allocation5], 56
    %85 = vst [vmem:[%s84] sm:$0xff] %v83
    %v86 = vmul.f32 %v41, %v63
    %v87 = vmul.f32 %v42, %v62
    %v88 = vsub.f32 %v86, %v87
    %s89 = scalar_lea.vmem [#allocation5], 64
    %90 = vst [vmem:[%s89] sm:$0xff] %v88
    // Predicated region
    $region10: #{tpu_custom_call.1} parent=1 // pred_check
      _
    $region11: #{tpu_custom_call.1} parent=1 // pred_check_branch
      %92 = sbr.rel (0) target = $region13
    $region12: #{tpu_custom_call.1} parent=1 // pred_region
      %s94 = ssub.s32 1152, 1152
      %95 = vsyncadd [#allocation4], %s94
      %s96 = sshll.u32 [#allocation5], 4
      %s97 = int_to_ptr.vmem [resolvable:$true] %s96
      %102 = dma.vmem_to_hbm [thread:$0]  %s97, 1152, %s1, [#allocation4], 128, 128, 8
    $region13: #{tpu_custom_call.1} parent=1 // pred_fallthru
      _
    // Predicated region
    $region14: #{tpu_custom_call.1} parent=1 // pred_check
      _
    $region15: #{tpu_custom_call.1} parent=1 // pred_check_branch
      %104 = sbr.rel (0) target = $region17
    $region16: #{tpu_custom_call.1} parent=1 // pred_region
      %105 = dma.done [#allocation4], 1152
    $region17: #{tpu_custom_call.1} parent=1 // pred_fallthru
      _
    %106 = vsyncpa [#allocation3], 1
    %107 = vsyncpa [#allocation4], 1

</llo_original>
